<compile_context>
chip_gen: v5e
topology: v5e:2x2
jax: 0.10.0
libtpu: 0.0.40
codegen_flags: <defaults>
</compile_context>

<pallas_src>
import math

import jax
import jax.numpy as jnp
from jax.experimental import pallas as pl
from jax.experimental.pallas import tpu as pltpu


def policy_mlp_kernel(xT_ref, w1_ref, b1_ref, w2_ref, b2_ref, oT_ref):
    """One batch tile in transposed (batch-as-lanes) layout.

    xT_ref : (4, TB)   f32   input states, transposed (streams)
    w1_ref : (32, 4)   f32   PyTorch layer1.weight (out, in) — VMEM resident
    b1_ref : (32, 1)   f32   layer1.bias as a column          — VMEM resident
    w2_ref : (2, 32)   f32   PyTorch layer2.weight (out, in)  — VMEM resident
    b2_ref : (2, 1)    f32   layer2.bias as a column          — VMEM resident
    oT_ref : (2, TB)   f32   sigmoid probabilities, transposed (streams)
    """
    xT = xT_ref[...]
    # layer1: h^T = W1 @ x^T + b1   (bias broadcasts over the lane/batch axis)
    h = jnp.dot(w1_ref[...], xT, preferred_element_type=jnp.float32) + b1_ref[...]
    h = jnp.maximum(h, 0.0)
    # layer2: z^T = W2 @ h^T + b2
    z = jnp.dot(w2_ref[...], h, preferred_element_type=jnp.float32) + b2_ref[...]
    # sigmoid: exp on EUP, approx reciprocal on EUP — no VPU divide on the hot path.
    oT_ref[...] = pl.reciprocal(1.0 + jnp.exp(-z), approx=True).astype(oT_ref.dtype)


def policy_network_forward(x, w1, b1, w2, b2, *, block_b=None):
    """x: (B, 4) f32; w1: (32, 4); b1: (32,); w2: (2, 32); b2: (2,).

    Returns sigmoid probabilities of shape (B, 2).
    """
    B = x.shape[0]
    if block_b is None:
        # Lane-dense tile: multiple of 128; cap keeps double-buffered tiles tiny
        # (< ~200 KiB VMEM) while amortizing per-grid-step overhead.
        block_b = min(4096, pl.cdiv(B, 128) * 128)
    B_pad = pl.cdiv(B, block_b) * block_b

    # Host-side layout plumbing: batch-as-lanes + zero-pad to the tile size.
    xT = jnp.pad(x.T, ((0, 0), (0, B_pad - B)))           # (4, B_pad)
    b1c = b1.reshape(32, 1)
    b2c = b2.reshape(2, 1)

    grid = (B_pad // block_b,)
    yT = pl.pallas_call(
        policy_mlp_kernel,
        out_shape=jax.ShapeDtypeStruct((2, B_pad), jnp.float32),
        grid_spec=pltpu.PrefetchScalarGridSpec(
            num_scalar_prefetch=0,
            grid=grid,
            in_specs=[
                pl.BlockSpec((4, block_b), lambda i: (0, i)),   # x^T tile streams
                pl.BlockSpec((32, 4), lambda i: (0, 0)),        # W1 resident
                pl.BlockSpec((32, 1), lambda i: (0, 0)),        # b1 resident
                pl.BlockSpec((2, 32), lambda i: (0, 0)),        # W2 resident
                pl.BlockSpec((2, 1), lambda i: (0, 0)),         # b2 resident
            ],
            out_specs=pl.BlockSpec((2, block_b), lambda i: (0, i)),
        ),
        compiler_params=pltpu.CompilerParams(
            dimension_semantics=("parallel",),   # shard batch across TCs (v7x)
        ),
    )(xT, w1, b1c, w2, b2c)

    return yT[:, :B].T                                        # (B, 2)


def init_params(key):
    """Deterministic init matching nn.Linear's U(-1/sqrt(fan_in), 1/sqrt(fan_in)).

    Weights kept in PyTorch (out_features, in_features) layout — the transposed
    kernel consumes them directly.
    """
    k1, k2, k3, k4 = jax.random.split(key, 4)
    bound1 = 1.0 / math.sqrt(4.0)
    bound2 = 1.0 / math.sqrt(32.0)
    w1 = jax.random.uniform(k1, (32, 4), jnp.float32, -bound1, bound1)
    b1 = jax.random.uniform(k2, (32,), jnp.float32, -bound1, bound1)
    w2 = jax.random.uniform(k3, (2, 32), jnp.float32, -bound2, bound2)
    b2 = jax.random.uniform(k4, (2,), jnp.float32, -bound2, bound2)
    return w1, b1, w2, b2


if __name__ == "__main__":
    key = jax.random.PRNGKey(0)
    k_params, k_x = jax.random.split(key)

    w1, b1, w2, b2 = init_params(k_params)

    # Small batch of CartPole-like 4-dim states (padded to one lane tile inside the
    # wrapper). For truly tiny RL batches a fused XLA matmul is the right tool; the
    # kernel pays off for large batched rollouts.
    batch = 8
    x = jax.random.normal(k_x, (batch, 4), dtype=jnp.float32)

    probs = policy_network_forward(x, w1, b1, w2, b2)
    probs = jax.block_until_ready(probs)

    # Pure-JAX reference of the same forward semantics (PyTorch weight layout).
    ref = jax.nn.sigmoid(jnp.maximum(x @ w1.T + b1, 0.0) @ w2.T + b2)
    assert probs.shape == (batch, 2)
    # Approx reciprocal on the EUP -> slightly looser tolerance than exact f32.
    assert jnp.allclose(probs, ref, atol=2e-3, rtol=2e-3), (
        float(jnp.max(jnp.abs(probs - ref)))
    )

    # TODO(synk): sample_actions (torch.bernoulli sampling + log-prob bookkeeping)
    # and compute_group_advantages are host-side utilities, not part of the forward
    # hot path; not implemented as kernels.

    print("KERNEL_OK")
</pallas_src>

<mosaic_0001>
module attributes {stable_mosaic.version = 11 : i64} {
  func.func @policy_mlp_kernel(%arg0: i32, %arg1: memref<4x128xf32, #tpu.memory_space<vmem>>, %arg2: memref<32x4xf32, #tpu.memory_space<vmem>>, %arg3: memref<32x1xf32, #tpu.memory_space<vmem>>, %arg4: memref<2x32xf32, #tpu.memory_space<vmem>>, %arg5: memref<2x1xf32, #tpu.memory_space<vmem>>, %arg6: memref<2x128xf32, #tpu.memory_space<vmem>>) attributes {dimension_semantics = [#tpu.dimension_semantics<parallel>], iteration_bounds = array<i64: 1>, scalar_prefetch = 0 : i64, scratch_operands = 0 : i64, tpu.core_type = #tpu.core_type<tc>, window_params = [{transform_indices = @transform_0, window_bounds = array<i64: 4, 128>}, {pipeline_mode = #tpu.pipeline_mode<synchronous>, transform_indices = @transform_1, window_bounds = array<i64: 32, 4>}, {pipeline_mode = #tpu.pipeline_mode<synchronous>, transform_indices = @transform_2, window_bounds = array<i64: 32, 1>}, {pipeline_mode = #tpu.pipeline_mode<synchronous>, transform_indices = @transform_3, window_bounds = array<i64: 2, 32>}, {pipeline_mode = #tpu.pipeline_mode<synchronous>, transform_indices = @transform_4, window_bounds = array<i64: 2, 1>}, {transform_indices = @transform_5, window_bounds = array<i64: 2, 128>}]} {
    %c0 = arith.constant 0 : index
    %c0_0 = arith.constant 0 : index
    %0 = vector.load %arg1[%c0, %c0_0] : memref<4x128xf32, #tpu.memory_space<vmem>>, vector<4x128xf32>
    %c0_1 = arith.constant 0 : index
    %c0_2 = arith.constant 0 : index
    %1 = vector.load %arg2[%c0_1, %c0_2] : memref<32x4xf32, #tpu.memory_space<vmem>>, vector<32x4xf32>
    %cst = arith.constant dense<0.000000e+00> : vector<32x128xf32>
    %2 = tpu.matmul %1, %0, %cst {dimension_numbers = #tpu.dot_dimension_numbers<[1], [0], [0], [1], [0, 0, 1, 1], [], []>} : vector<32x4xf32>, vector<4x128xf32>, vector<32x128xf32> -> vector<32x128xf32>
    %c0_3 = arith.constant 0 : index
    %c0_4 = arith.constant 0 : index
    %3 = vector.load %arg3[%c0_3, %c0_4] : memref<32x1xf32, #tpu.memory_space<vmem>>, vector<32x1xf32>
    %4 = vector.broadcast %3 : vector<32x1xf32> to vector<32x128xf32>
    %5 = arith.addf %2, %4 : vector<32x128xf32>
    %cst_5 = arith.constant 0.000000e+00 : f32
    %6 = vector.broadcast %cst_5 : f32 to vector<32x128xf32>
    %7 = arith.maximumf %5, %6 : vector<32x128xf32>
    %c0_6 = arith.constant 0 : index
    %c0_7 = arith.constant 0 : index
    %8 = vector.load %arg4[%c0_6, %c0_7] : memref<2x32xf32, #tpu.memory_space<vmem>>, vector<2x32xf32>
    %cst_8 = arith.constant dense<0.000000e+00> : vector<2x128xf32>
    %9 = tpu.matmul %8, %7, %cst_8 {dimension_numbers = #tpu.dot_dimension_numbers<[1], [0], [0], [1], [0, 0, 1, 1], [], []>} : vector<2x32xf32>, vector<32x128xf32>, vector<2x128xf32> -> vector<2x128xf32>
    %c0_9 = arith.constant 0 : index
    %c0_10 = arith.constant 0 : index
    %10 = vector.load %arg5[%c0_9, %c0_10] : memref<2x1xf32, #tpu.memory_space<vmem>>, vector<2x1xf32>
    %11 = vector.broadcast %10 : vector<2x1xf32> to vector<2x128xf32>
    %12 = arith.addf %9, %11 : vector<2x128xf32>
    %cst_11 = arith.constant 0.000000e+00 : f32
    %13 = vector.broadcast %cst_11 : f32 to vector<2x128xf32>
    %14 = arith.subf %13, %12 : vector<2x128xf32>
    %15 = math.exp %14 : vector<2x128xf32>
    %cst_12 = arith.constant 1.000000e+00 : f32
    %16 = vector.broadcast %cst_12 : f32 to vector<2x128xf32>
    %17 = arith.addf %16, %15 : vector<2x128xf32>
    %18 = tpu.reciprocal %17 {approx = true} : vector<2x128xf32> -> vector<2x128xf32>
    %c0_13 = arith.constant 0 : index
    %c0_14 = arith.constant 0 : index
    %19 = vector.load %arg6[%c0_13, %c0_14] : memref<2x128xf32, #tpu.memory_space<vmem>>, vector<2x128xf32>
    tpu.vector_store %arg6[%c0_13, %c0_14], %18 {strides = array<i32>} : memref<2x128xf32, #tpu.memory_space<vmem>>, vector<2x128xf32>,
    return
  }
  func.func @transform_0(%arg0: i32) -> (i32, i32) {
    %c0_i32 = arith.constant 0 : i32
    %c0_i32_0 = arith.constant 0 : i32
    return %c0_i32, %arg0 : i32, i32
  }
  func.func @transform_1(%arg0: i32) -> (i32, i32) {
    %c0_i32 = arith.constant 0 : i32
    %c0_i32_0 = arith.constant 0 : i32
    %c0_i32_1 = arith.constant 0 : i32
    return %c0_i32, %c0_i32_0 : i32, i32
  }
  func.func @transform_2(%arg0: i32) -> (i32, i32) {
    %c0_i32 = arith.constant 0 : i32
    %c0_i32_0 = arith.constant 0 : i32
    %c0_i32_1 = arith.constant 0 : i32
    return %c0_i32, %c0_i32_0 : i32, i32
  }
  func.func @transform_3(%arg0: i32) -> (i32, i32) {
    %c0_i32 = arith.constant 0 : i32
    %c0_i32_0 = arith.constant 0 : i32
    %c0_i32_1 = arith.constant 0 : i32
    return %c0_i32, %c0_i32_0 : i32, i32
  }
  func.func @transform_4(%arg0: i32) -> (i32, i32) {
    %c0_i32 = arith.constant 0 : i32
    %c0_i32_0 = arith.constant 0 : i32
    %c0_i32_1 = arith.constant 0 : i32
    return %c0_i32, %c0_i32_0 : i32, i32
  }
  func.func @transform_5(%arg0: i32) -> (i32, i32) {
    %c0_i32 = arith.constant 0 : i32
    %c0_i32_0 = arith.constant 0 : i32
    return %c0_i32, %arg0 : i32, i32
  }
}

</mosaic_0001>

<llo_original>
// kernel: tpu_custom_call.1
$region0: #{tpu_custom_call.1}
  #allocation0 [shape = 'u32[]', space=smem, size = 0x4, offset = 0x4, fixed_abs, tag = 'smem constant byte address 0x4 - core index']
  #allocation1 [shape = 'u32[72,128]{1,0:T(1,128)}', space=vmem, size = 0x9000, scoped, tag = 'internal scratch']
  %s0 = inlined_call_operand.vmem [shape: f32[4,128], index: 0, kind: input, shape index: {}]
  %s1 = inlined_call_operand.vmem [shape: f32[32,4], index: 1, kind: input, shape index: {}]
  %s2 = inlined_call_operand.vmem [shape: f32[32,1], index: 2, kind: input, shape index: {}]
  %s3 = inlined_call_operand.vmem [shape: f32[2,32], index: 3, kind: input, shape index: {}]
  %s4 = inlined_call_operand.vmem [shape: f32[2,1], index: 4, kind: input, shape index: {}]
  %s5 = inlined_call_operand.hbm [shape: f32[2,128], index: 5, kind: output, shape index: {}]
  %s6 = sld [smem:[#allocation0]]
  $region30: #{tpu_custom_call.1} parent=0
    _
  %s8 = ssub.s32 1, %s6
  %s9 = scalar_select 0, %s8, %s6
  $region1: #{tpu_custom_call.1} parent=0
    #allocation2 [shape = 'u8[1024]{0}', space=vmem, size = 0x400, scoped, tag = 'output window, operand 0, single buffered']
    #allocation3 [shape = 's32[1]{0}', space=sflag, size = 0x4, scoped, tag = 'scoped memory for tpu_custom_call.1']
    %10 = vsyncpa [#allocation3], 0
    // Predicated region
    $region2: #{tpu_custom_call.1} parent=1 // pred_check
      _
    $region3: #{tpu_custom_call.1} parent=1 // pred_check_branch
      %12 = sbr.rel (0) target = $region5
    $region4: #{tpu_custom_call.1} parent=1 // pred_region
      _
    $region5: #{tpu_custom_call.1} parent=1 // pred_fallthru
      _
    // Predicated region
    $region6: #{tpu_custom_call.1} parent=1 // pred_check
      _
    $region7: #{tpu_custom_call.1} parent=1 // pred_check_branch
      %14 = sbr.rel (0) target = $region9
    $region8: #{tpu_custom_call.1} parent=1 // pred_region
      _
    $region9: #{tpu_custom_call.1} parent=1 // pred_fallthru
      _
    // Predicated region
    $region10: #{tpu_custom_call.1} parent=1 // pred_check
      _
    $region11: #{tpu_custom_call.1} parent=1 // pred_check_branch
      %16 = sbr.rel (0) target = $region13
    $region12: #{tpu_custom_call.1} parent=1 // pred_region
      _
    $region13: #{tpu_custom_call.1} parent=1 // pred_fallthru
      _
    // Predicated region
    $region14: #{tpu_custom_call.1} parent=1 // pred_check
      _
    $region15: #{tpu_custom_call.1} parent=1 // pred_check_branch
      %18 = sbr.rel (0) target = $region17
    $region16: #{tpu_custom_call.1} parent=1 // pred_region
      _
    $region17: #{tpu_custom_call.1} parent=1 // pred_fallthru
      _
    // Predicated region
    $region18: #{tpu_custom_call.1} parent=1 // pred_check
      _
    $region19: #{tpu_custom_call.1} parent=1 // pred_check_branch
      %20 = sbr.rel (0) target = $region21
    $region20: #{tpu_custom_call.1} parent=1 // pred_region
      _
    $region21: #{tpu_custom_call.1} parent=1 // pred_fallthru
      _
    %v21 = vld [vmem:[%s0] sm:$0xf]
    %v22 = vld [vmem:[%s1] sm:$0xff]
    %v23 = vld [vmem:[%s1 + $0x8] sm:$0xff]
    %v24 = vld [vmem:[%s1 + $0x10] sm:$0xff]
    %v25 = vld [vmem:[%s1 + $0x18] sm:$0xff]
    %v26 = vld [vmem:[%s2] sm:$0xff]
    %v27 = vld [vmem:[%s2 + $0x8] sm:$0xff]
    %v28 = vld [vmem:[%s2 + $0x10] sm:$0xff]
    %v29 = vld [vmem:[%s2 + $0x18] sm:$0xff]
    %31 = vset.pattern.permute.xlu0 0
    %32 = vperm.xlu0 %31, %v26
    %v33 = vpop.permute.xlu0 %32
    %36 = vset.pattern.permute.xlu0 0
    %37 = vperm.xlu0 %36, %v27
    %v38 = vpop.permute.xlu0 %37
    %41 = vset.pattern.permute.xlu0 0
    %42 = vperm.xlu0 %41, %v28
    %v43 = vpop.permute.xlu0 %42
    %46 = vset.pattern.permute.xlu0 0
    %47 = vperm.xlu0 %46, %v29
    %v48 = vpop.permute.xlu0 %47
    %vm50 = vcmask 31744
    %v52 = vsel %vm50, %v22, 0
    %v55 = vsel %vm50, %v23, 0
    %v58 = vsel %vm50, %v24, 0
    %v61 = vsel %vm50, %v25, 0
    %vm63 = vcmask 1043456
    %v65 = vsel %vm63, %v21, 0
    %67 = vmatpush.msra.mxu0 0.0
    %68 = vmatpush.msra.mxu0 0.0
    %69 = vmatpush.msra.mxu0 0.0
    %70 = vmatpush.msra.mxu0 0.0
    %71 = vmatpush.msra.mxu0 0.0
    %72 = vmatpush.msra.mxu0 0.0
    %73 = vmatpush.msra.mxu0 0.0
    %74 = vmatpush.msra.mxu0 0.0
    %75 = vmatpush.msra.mxu0 0.0
    %76 = vmatpush.msra.mxu0 0.0
    %77 = vmatpush.msra.mxu0 0.0
    %78 = vmatpush.msra.mxu0 0.0
    %79 = vmatpush.msra.mxu0 0.0
    %80 = vmatpush.msra.mxu0 0.0
    %81 = vmatpush.msra.mxu0 0.0
    %82 = vmatpush.msra.mxu0 %v65
    %83 = vmatmul.f32.gmra.mxu0 %v52
    %v84 = vpop.f32.mrf.mxu0
    %v85 = vadd.f32 %v33, %v84
    %86 = vmatmul.f32.gmra.mxu0 %v55
    %v87 = vpop.f32.mrf.mxu0
    %v88 = vadd.f32 %v38, %v87
    %89 = vmatmul.f32.gmra.mxu0 %v58
    %v90 = vpop.f32.mrf.mxu0
    %v91 = vadd.f32 %v43, %v90
    %92 = vmatmul.f32.gmra.mxu0 %v61
    %v93 = vpop.f32.mrf.mxu0
    %v94 = vadd.f32 %v48, %v93
    %95 = vdwg.mxu0
    %v96 = vmax.f32 %v85, 0.0
    %v97 = vmax.f32 %v88, 0.0
    %v98 = vmax.f32 %v91, 0.0
    %v99 = vmax.f32 %v94, 0.0
    %v100 = vld [vmem:[%s3] sm:$0x3]
    %v101 = vld [vmem:[%s4] sm:$0x3]
    %103 = vset.pattern.permute.xlu0 0
    %104 = vperm.xlu0 %103, %v101
    %v105 = vpop.permute.xlu0 %104
    %vm107 = vcmask 261120
    %v109 = vsel %vm107, %v100, 0
    %111 = vmatpush.msra.mxu0 0.0
    %112 = vmatpush.msra.mxu0 0.0
    %113 = vmatpush.msra.mxu0 0.0
    %114 = vmatpush.msra.mxu0 0.0
    %115 = vmatpush.msra.mxu0 0.0
    %116 = vmatpush.msra.mxu0 0.0
    %117 = vmatpush.msra.mxu0 0.0
    %118 = vmatpush.msra.mxu0 0.0
    %119 = vmatpush.msra.mxu0 0.0
    %120 = vmatpush.msra.mxu0 0.0
    %121 = vmatpush.msra.mxu0 0.0
    %122 = vmatpush.msra.mxu0 0.0
    %123 = vmatpush.msra.mxu0 %v99
    %124 = vmatpush.msra.mxu0 %v98
    %125 = vmatpush.msra.mxu0 %v97
    %126 = vmatpush.msra.mxu0 %v96
    %127 = vmatmul.f32.gmra.mxu0 %v109
    %v128 = vpop.f32.mrf.mxu0
    %v129 = vadd.f32 %v105, %v128
    %130 = vdwg.mxu0
    %v131 = vsub.f32 0.0, %v129
    %v132 = vmul.f32 %v131, 1.442695
    %v133 = vpow.pop %v132
    %v134 = vadd.f32 %v133, 1.0
    %v135 = vrcp.pop %v134
    %136 = vst [vmem:[#allocation2] sm:$0x3] %v135
    // Predicated region
    $region22: #{tpu_custom_call.1} parent=1 // pred_check
      _
    $region23: #{tpu_custom_call.1} parent=1 // pred_check_branch
      %138 = sbr.rel (0) target = $region25
    $region24: #{tpu_custom_call.1} parent=1 // pred_region
      %140 = vsyncadd [#allocation3], 0
      %s142 = sshll.u32 [#allocation2], 4
      %s143 = int_to_ptr.vmem [resolvable:$true] %s142
      %s144 = sshll.u32 %s5, 4
      %s145 = int_to_ptr.hbm [resolvable:$true] %s144
      %147 = dma.vmem_to_hbm [thread:$0]  %s143, 32, %s145, [#allocation3]
    $region25: #{tpu_custom_call.1} parent=1 // pred_fallthru
      _
    // Predicated region
    $region26: #{tpu_custom_call.1} parent=1 // pred_check
      _
    $region27: #{tpu_custom_call.1} parent=1 // pred_check_branch
      %149 = sbr.rel (0) target = $region29
    $region28: #{tpu_custom_call.1} parent=1 // pred_region
      %151 = dma.done [#allocation3], 32
    $region29: #{tpu_custom_call.1} parent=1 // pred_fallthru
      _
    %152 = vsyncpa [#allocation3], 1

</llo_original>
